<compile_context>
chip_gen: v7x
topology: tpu7x:2x2x1
jax: 0.10.0
libtpu: 0.0.40
codegen_flags: <defaults>
</compile_context>

<pallas_src>
import functools

import jax
import jax.numpy as jnp
from jax import lax
from jax.experimental import pallas as pl
from jax.experimental.pallas import tpu as pltpu

_LANE = 128
_MIB = 1024 * 1024
_FUSE_NC = 32      # nc >= this -> fused (B, nc, HW) output layout


def _round_up(x, m):
    return ((x + m - 1) // m) * m


def _cdiv(a, b):
    return (a + b - 1) // b


def _tile_policy():
    """Per-generation tiling knobs (host-side, trace-time only)."""
    kind = ""
    try:
        kind = jax.devices()[0].device_kind.lower()
    except Exception:
        pass
    if "v7" in kind:
        # 64 MiB VMEM per TensorCore, ~3.2 TB/s HBM, 2 TCs (megacore):
        # big tiles to amortize the ~0.35us/step overhead, but force >= 4
        # grid steps so both cores get work; stay well under 64 MiB.
        return dict(vmem_limit=48 * _MIB, budget=40 * _MIB, block_m=4096,
                    n_buf=3, min_steps=4)
    if "v6" in kind:
        # 128 MiB VMEM, ~1.4 TB/s HBM.
        return dict(vmem_limit=64 * _MIB, budget=48 * _MIB, block_m=2048,
                    n_buf=3, min_steps=1)
    if "v5 lite" in kind or "v5e" in kind or "v5lite" in kind:
        # 128 MiB VMEM, ~0.8 TB/s HBM: 2-deep buffering already hides DMA;
        # explicit vmem_limit must exceed the 16 MiB scoped default.
        return dict(vmem_limit=64 * _MIB, budget=48 * _MIB, block_m=1024,
                    n_buf=2, min_steps=1)
    # Unknown / older parts: conservative.
    return dict(vmem_limit=32 * _MIB, budget=24 * _MIB, block_m=1024,
                n_buf=2, min_steps=1)


def _max_rows_for_budget(budget, in_channels, nc, x_itemsize, out_itemsize,
                         n_buf):
    """Largest row-tile (multiple of 128) whose pipelined VMEM buffers fit.

    Accounts for lane padding of C to 128, dtype sublane tiles, the
    double-buffered (nc, rows) output and the resident (nc, C) weight + bias.
    """
    c_pad = _round_up(in_channels, _LANE)
    sub_x = max(1, 32 // x_itemsize)       # sublane tile of the compute dtype
    sub_out = max(1, 32 // out_itemsize)   # sublane tile of the output dtype
    fixed = 2 * _round_up(nc, sub_x) * c_pad * x_itemsize      # weight (2-buf)
    fixed += 2 * _round_up(nc, 8) * _LANE * 4                  # f32 bias
    fixed += 1 * _MIB                                          # headroom
    per_row = (n_buf * c_pad * x_itemsize                      # X stream
               + 2 * _round_up(nc, sub_out) * out_itemsize)    # output (2-buf)
    rows = max(0, budget - fixed) // per_row
    return max(_LANE, (rows // _LANE) * _LANE)


def _pick_tile(total_rows, bm, min_steps, n_already_split):
    """Row-tile for an axis of length total_rows (full-extent if it fits)."""
    target = bm
    if min_steps > 1 and n_already_split < min_steps and total_rows >= 2 * _LANE:
        want = _cdiv(min_steps, n_already_split)
        target = min(target,
                     max(_LANE, _round_up(_cdiv(total_rows, want), _LANE)))
    if target >= total_rows:
        return total_rows                    # single full-extent block (legal)
    return max(_LANE, (target // _LANE) * _LANE)


def _conv1x1_kernel(x_ref, w_ref, b_ref, o_ref):
    # x_ref: (TM, C) pixel tile; w_ref: (nc, C); b_ref: (nc, 1) f32;
    # o_ref: (nc, TM) lane-dense output tile.
    acc = lax.dot_general(
        w_ref[...], x_ref[...],
        dimension_numbers=(((1,), (1,)), ((), ())),   # W @ X^T on the MXU
        preferred_element_type=jnp.float32,
    )
    o_ref[...] = (acc + b_ref[...]).astype(o_ref.dtype)


@functools.partial(
    jax.jit, static_argnames=("tokenH", "tokenW", "block_m", "compute_dtype"))
def linear_classifier_token_forward(x, weight, bias, *, tokenH, tokenW,
                                    block_m=None, compute_dtype=None):
    """Forward of LinearClassifierToken.

    x:      (..., C) token features, prod(leading dims) == B * tokenH * tokenW.
    weight: (nc, C)  (Conv2d weight squeezed over the 1x1 kernel dims)
    bias:   (nc,)
    returns (B, nc, tokenH, tokenW), dtype == x.dtype.

    compute_dtype: optional stream dtype (e.g. jnp.bfloat16). Accumulation is
    always f32. The bf16 fast path pays off when x already arrives in bf16
    (casting f32->bf16 here would itself cost an extra HBM pass).
    """
    in_channels = x.shape[-1]
    nc, wc = weight.shape
    if wc != in_channels:
        raise ValueError(f"weight channels {wc} != input channels {in_channels}")

    hw = tokenH * tokenW
    M = 1
    for d in x.shape[:-1]:
        M *= d
    if M % hw != 0:
        raise ValueError(
            f"prod(leading dims)={M} is not a multiple of tokenH*tokenW={hw}")
    B = M // hw

    out_dtype = jnp.dtype(x.dtype)
    cdtype = jnp.dtype(compute_dtype) if compute_dtype is not None else out_dtype
    x_itemsize = cdtype.itemsize
    out_itemsize = out_dtype.itemsize

    policy = _tile_policy()
    n_buf = policy["n_buf"]
    min_steps = policy["min_steps"]
    bm_budget = _max_rows_for_budget(policy["budget"], in_channels, nc,
                                     x_itemsize, out_itemsize, n_buf)
    bm = max(_LANE, min(block_m if block_m is not None else policy["block_m"],
                        bm_budget))

    x_c = x.astype(cdtype)
    w = weight.astype(cdtype)                        # (nc, C)
    b2 = bias.reshape(nc, 1).astype(jnp.float32)     # broadcast over lanes

    def _x_spec(shape, imap, num_steps):
        if num_steps > n_buf:
            return pl.BlockSpec(shape, imap, pipeline_mode=pl.Buffered(n_buf))
        return pl.BlockSpec(shape, imap)

    cost = pl.CostEstimate(
        flops=2 * M * in_channels * nc,
        transcendentals=0,
        bytes_accessed=(M * in_channels * x_itemsize
                        + nc * in_channels * x_itemsize
                        + nc * M * out_itemsize),
    )

    if nc < _FUSE_NC:
        # ---- Path A: classification-style head (small nc). ----------------
        # Flatten all pixels across the batch for maximal row tiles; ragged M
        # is handled by Pallas partial blocks (no pad, no slice).
        x_flat = x_c.reshape(M, in_channels)
        bm_a = _pick_tile(M, bm, min_steps, 1)
        grid_m = _cdiv(M, bm_a)

        out_t = pl.pallas_call(
            _conv1x1_kernel,
            out_shape=jax.ShapeDtypeStruct((nc, M), out_dtype),
            grid_spec=pltpu.PrefetchScalarGridSpec(
                num_scalar_prefetch=0,
                grid=(grid_m,),
                in_specs=[
                    _x_spec((bm_a, in_channels), lambda i: (i, 0), grid_m),
                    pl.BlockSpec((nc, in_channels), lambda i: (0, 0)),
                    pl.BlockSpec((nc, 1), lambda i: (0, 0)),
                ],
                out_specs=pl.BlockSpec((nc, bm_a), lambda i: (0, i)),
            ),
            compiler_params=pltpu.CompilerParams(
                dimension_semantics=("parallel",),      # megacore-shardable
                vmem_limit_bytes=policy["vmem_limit"],
            ),
            cost_estimate=cost,
        )(x_flat, w, b2)

        # Tiny epilogue (traffic ~ nc/C of the X stream): contiguous H*W block
        # swap, not a lane transpose.
        out = out_t.reshape(nc, B, tokenH, tokenW)
        return jnp.transpose(out, (1, 0, 2, 3))

    # ---- Path B: segmentation-style head (nc >= 32). ----------------------
    # Grid over (batch, HW tiles); output is written directly in (B, nc, HW)
    # layout so the NCHW epilogue is a free reshape (no extra HBM pass over
    # the output, which at large nc rivals the X stream).
    x3 = x_c.reshape(B, hw, in_channels)
    bm_hw = _pick_tile(hw, bm, min_steps, B)
    grid_hw = _cdiv(hw, bm_hw)

    out3 = pl.pallas_call(
        _conv1x1_kernel,
        out_shape=jax.ShapeDtypeStruct((B, nc, hw), out_dtype),
        grid_spec=pltpu.PrefetchScalarGridSpec(
            num_scalar_prefetch=0,
            grid=(B, grid_hw),
            in_specs=[
                _x_spec((None, bm_hw, in_channels), lambda b, i: (b, i, 0),
                        B * grid_hw),
                pl.BlockSpec((nc, in_channels), lambda b, i: (0, 0)),
                pl.BlockSpec((nc, 1), lambda b, i: (0, 0)),
            ],
            out_specs=pl.BlockSpec((None, nc, bm_hw), lambda b, i: (b, 0, i)),
        ),
        compiler_params=pltpu.CompilerParams(
            dimension_semantics=("parallel", "parallel"),
            vmem_limit_bytes=policy["vmem_limit"],
        ),
        cost_estimate=cost,
    )(x3, w, b2)

    return out3.reshape(B, nc, tokenH, tokenW)


if __name__ == "__main__":
    key = jax.random.PRNGKey(0)

    # ---- Test 1: classification head (small nc), f32, exact check. --------
    B, C, nc, H, W = 2, 32, 4, 16, 16
    k1, k2, k3, key = jax.random.split(key, 4)
    bound = 1.0 / (C ** 0.5)
    weight = jax.random.uniform(k2, (nc, C), jnp.float32, -bound, bound)
    bias = jax.random.uniform(k3, (nc,), jnp.float32, -bound, bound)
    # (B, n_tokens, C) token features, as DINOv2 feeds the module.
    x = jax.random.normal(k1, (B, H * W, C), jnp.float32)

    out = linear_classifier_token_forward(x, weight, bias, tokenH=H, tokenW=W)
    out = jax.block_until_ready(out)
    ref = (jnp.einsum("bhwc,oc->bohw", x.reshape(B, H, W, C), weight)
           + bias[None, :, None, None])
    assert out.shape == (B, nc, H, W)
    assert out.dtype == x.dtype
    assert jnp.allclose(out, ref, atol=1e-5, rtol=1e-5)

    # ---- Test 2: bf16 streaming fast path (x already in bf16). ------------
    x_bf = x.astype(jnp.bfloat16)
    out_bf = linear_classifier_token_forward(
        x_bf, weight, bias, tokenH=H, tokenW=W, compute_dtype=jnp.bfloat16)
    out_bf = jax.block_until_ready(out_bf)
    ref_bf = (jnp.einsum("bhwc,oc->bohw",
                         x_bf.astype(jnp.float32).reshape(B, H, W, C),
                         weight.astype(jnp.bfloat16).astype(jnp.float32))
              + bias[None, :, None, None])
    assert out_bf.shape == (B, nc, H, W)
    assert out_bf.dtype == jnp.bfloat16
    assert jnp.allclose(out_bf.astype(jnp.float32), ref_bf, atol=3e-2, rtol=3e-2)

    # ---- Test 3: segmentation-style head (nc >= 32): fused NCHW path. -----
    B2, C2, nc2, H2, W2 = 2, 64, 32, 8, 8
    k4, k5, k6, key = jax.random.split(key, 4)
    bound2 = 1.0 / (C2 ** 0.5)
    weight2 = jax.random.uniform(k5, (nc2, C2), jnp.float32, -bound2, bound2)
    bias2 = jax.random.uniform(k6, (nc2,), jnp.float32, -bound2, bound2)
    x2 = jax.random.normal(k4, (B2, H2 * W2, C2), jnp.float32)

    out2 = linear_classifier_token_forward(x2, weight2, bias2,
                                           tokenH=H2, tokenW=W2)
    out2 = jax.block_until_ready(out2)
    ref2 = (jnp.einsum("bhwc,oc->bohw", x2.reshape(B2, H2, W2, C2), weight2)
            + bias2[None, :, None, None])
    assert out2.shape == (B2, nc2, H2, W2)
    assert jnp.allclose(out2, ref2, atol=1e-4, rtol=1e-4)

    print("KERNEL_OK")
</pallas_src>

<mosaic_0001>
module attributes {stable_mosaic.version = 11 : i64} {
  func.func @_conv1x1_kernel(%arg0: i32, %arg1: memref<512x32xf32, #tpu.memory_space<vmem>>, %arg2: memref<4x32xf32, #tpu.memory_space<vmem>>, %arg3: memref<4x1xf32, #tpu.memory_space<vmem>>, %arg4: memref<4x512xf32, #tpu.memory_space<vmem>>) attributes {dimension_semantics = [#tpu.dimension_semantics<parallel>], iteration_bounds = array<i64: 1>, scalar_prefetch = 0 : i64, scratch_operands = 0 : i64, tpu.core_type = #tpu.core_type<tc>, window_params = [{transform_indices = @transform_0, window_bounds = array<i64: 512, 32>}, {pipeline_mode = #tpu.pipeline_mode<synchronous>, transform_indices = @transform_1, window_bounds = array<i64: 4, 32>}, {pipeline_mode = #tpu.pipeline_mode<synchronous>, transform_indices = @transform_2, window_bounds = array<i64: 4, 1>}, {transform_indices = @transform_3, window_bounds = array<i64: 4, 512>}]} {
    %c0 = arith.constant 0 : index
    %c0_0 = arith.constant 0 : index
    %0 = vector.load %arg2[%c0, %c0_0] : memref<4x32xf32, #tpu.memory_space<vmem>>, vector<4x32xf32>
    %c0_1 = arith.constant 0 : index
    %c0_2 = arith.constant 0 : index
    %1 = vector.load %arg1[%c0_1, %c0_2] : memref<512x32xf32, #tpu.memory_space<vmem>>, vector<512x32xf32>
    %cst = arith.constant dense<0.000000e+00> : vector<4x512xf32>
    %2 = tpu.matmul %0, %1, %cst {dimension_numbers = #tpu.dot_dimension_numbers<[1], [1], [0], [0], [0, 0, 1, 0], [], []>} : vector<4x32xf32>, vector<512x32xf32>, vector<4x512xf32> -> vector<4x512xf32>
    %c0_3 = arith.constant 0 : index
    %c0_4 = arith.constant 0 : index
    %3 = vector.load %arg3[%c0_3, %c0_4] : memref<4x1xf32, #tpu.memory_space<vmem>>, vector<4x1xf32>
    %4 = vector.broadcast %3 : vector<4x1xf32> to vector<4x512xf32>
    %5 = arith.addf %2, %4 : vector<4x512xf32>
    %c0_5 = arith.constant 0 : index
    %c0_6 = arith.constant 0 : index
    %6 = vector.load %arg4[%c0_5, %c0_6] : memref<4x512xf32, #tpu.memory_space<vmem>>, vector<4x512xf32>
    tpu.vector_store %arg4[%c0_5, %c0_6], %5 {strides = array<i32>} : memref<4x512xf32, #tpu.memory_space<vmem>>, vector<4x512xf32>,
    return
  }
  func.func @transform_0(%arg0: i32) -> (i32, i32) {
    %c0_i32 = arith.constant 0 : i32
    %c0_i32_0 = arith.constant 0 : i32
    return %arg0, %c0_i32 : i32, i32
  }
  func.func @transform_1(%arg0: i32) -> (i32, i32) {
    %c0_i32 = arith.constant 0 : i32
    %c0_i32_0 = arith.constant 0 : i32
    %c0_i32_1 = arith.constant 0 : i32
    return %c0_i32, %c0_i32_0 : i32, i32
  }
  func.func @transform_2(%arg0: i32) -> (i32, i32) {
    %c0_i32 = arith.constant 0 : i32
    %c0_i32_0 = arith.constant 0 : i32
    %c0_i32_1 = arith.constant 0 : i32
    return %c0_i32, %c0_i32_0 : i32, i32
  }
  func.func @transform_3(%arg0: i32) -> (i32, i32) {
    %c0_i32 = arith.constant 0 : i32
    %c0_i32_0 = arith.constant 0 : i32
    return %c0_i32, %arg0 : i32, i32
  }
}

</mosaic_0001>

<llo_original>
// kernel: linear_classifier_token_forward.1
$region0: #{linear_classifier_token_forward.1}
  #allocation0 [shape = 'u32[]', space=smem, size = 0x4, offset = 0x4, fixed_abs, tag = 'smem constant byte address 0x4 - core index']
  #allocation1 [shape = 'u32[144,128]{1,0:T(1,128)}', space=vmem, size = 0x12000, scoped, tag = 'internal scratch']
  %s0 = inlined_call_operand.vmem [shape: f32[512,32], index: 0, kind: input, shape index: {}]
  %s1 = inlined_call_operand.vmem [shape: f32[4,32], index: 1, kind: input, shape index: {}]
  %s2 = inlined_call_operand.vmem [shape: f32[4,1], index: 2, kind: input, shape index: {}]
  %s3 = inlined_call_operand.vmem [shape: f32[4,512], index: 3, kind: output, shape index: {}]
  %s4 = sld [smem:[#allocation0]]
  $region22: #{linear_classifier_token_forward.1} parent=0
    _
  %s6 = ssub.s32 1, %s4
  %s7 = scalar_select 0, %s6, %s4
  // Predicated region
  $region2: #{linear_classifier_token_forward.1} parent=0 // pred_check
    _
  $region3: #{linear_classifier_token_forward.1} parent=0 // pred_check_branch
    %9 = sbr.rel (0) target = $region5
  $region4: #{linear_classifier_token_forward.1} parent=0 // pred_region
    _
  $region5: #{linear_classifier_token_forward.1} parent=0 // pred_fallthru
    _
  // Predicated region
  $region6: #{linear_classifier_token_forward.1} parent=0 // pred_check
    _
  $region7: #{linear_classifier_token_forward.1} parent=0 // pred_check_branch
    %11 = sbr.rel (0) target = $region9
  $region8: #{linear_classifier_token_forward.1} parent=0 // pred_region
    _
  $region9: #{linear_classifier_token_forward.1} parent=0 // pred_fallthru
    _
  // Predicated region
  $region10: #{linear_classifier_token_forward.1} parent=0 // pred_check
    _
  $region11: #{linear_classifier_token_forward.1} parent=0 // pred_check_branch
    %13 = sbr.rel (0) target = $region13
  $region12: #{linear_classifier_token_forward.1} parent=0 // pred_region
    _
  $region13: #{linear_classifier_token_forward.1} parent=0 // pred_fallthru
    _
  %v14 = vld [vmem:[%s1] sm:$0xf]
  %v15 = vld [vmem:[%s0] sm:$0xff]
  %v16 = vld [vmem:[%s0 + $0x8] sm:$0xff]
  %v17 = vld [vmem:[%s0 + $0x10] sm:$0xff]
  %v18 = vld [vmem:[%s0 + $0x18] sm:$0xff]
  %v19 = vld [vmem:[%s0 + $0x20] sm:$0xff]
  %v20 = vld [vmem:[%s0 + $0x28] sm:$0xff]
  %v21 = vld [vmem:[%s0 + $0x30] sm:$0xff]
  %v22 = vld [vmem:[%s0 + $0x38] sm:$0xff]
  %v23 = vld [vmem:[%s0 + $0x40] sm:$0xff]
  %v24 = vld [vmem:[%s0 + $0x48] sm:$0xff]
  %v25 = vld [vmem:[%s0 + $0x50] sm:$0xff]
  %v26 = vld [vmem:[%s0 + $0x58] sm:$0xff]
  %v27 = vld [vmem:[%s0 + $0x60] sm:$0xff]
  %v28 = vld [vmem:[%s0 + $0x68] sm:$0xff]
  %v29 = vld [vmem:[%s0 + $0x70] sm:$0xff]
  %v30 = vld [vmem:[%s0 + $0x78] sm:$0xff]
  %v31 = vld [vmem:[%s0 + $0x80] sm:$0xff]
  %v32 = vld [vmem:[%s0 + $0x88] sm:$0xff]
  %v33 = vld [vmem:[%s0 + $0x90] sm:$0xff]
  %v34 = vld [vmem:[%s0 + $0x98] sm:$0xff]
  %v35 = vld [vmem:[%s0 + $0xa0] sm:$0xff]
  %v36 = vld [vmem:[%s0 + $0xa8] sm:$0xff]
  %v37 = vld [vmem:[%s0 + $0xb0] sm:$0xff]
  %v38 = vld [vmem:[%s0 + $0xb8] sm:$0xff]
  %v39 = vld [vmem:[%s0 + $0xc0] sm:$0xff]
  %v40 = vld [vmem:[%s0 + $0xc8] sm:$0xff]
  %v41 = vld [vmem:[%s0 + $0xd0] sm:$0xff]
  %v42 = vld [vmem:[%s0 + $0xd8] sm:$0xff]
  %v43 = vld [vmem:[%s0 + $0xe0] sm:$0xff]
  %v44 = vld [vmem:[%s0 + $0xe8] sm:$0xff]
  %v45 = vld [vmem:[%s0 + $0xf0] sm:$0xff]
  %v46 = vld [vmem:[%s0 + $0xf8] sm:$0xff]
  %v47 = vld [vmem:[%s0 + $0x100] sm:$0xff]
  %v48 = vld [vmem:[%s0 + $0x108] sm:$0xff]
  %v49 = vld [vmem:[%s0 + $0x110] sm:$0xff]
  %v50 = vld [vmem:[%s0 + $0x118] sm:$0xff]
  %v51 = vld [vmem:[%s0 + $0x120] sm:$0xff]
  %v52 = vld [vmem:[%s0 + $0x128] sm:$0xff]
  %v53 = vld [vmem:[%s0 + $0x130] sm:$0xff]
  %v54 = vld [vmem:[%s0 + $0x138] sm:$0xff]
  %v55 = vld [vmem:[%s0 + $0x140] sm:$0xff]
  %v56 = vld [vmem:[%s0 + $0x148] sm:$0xff]
  %v57 = vld [vmem:[%s0 + $0x150] sm:$0xff]
  %v58 = vld [vmem:[%s0 + $0x158] sm:$0xff]
  %v59 = vld [vmem:[%s0 + $0x160] sm:$0xff]
  %v60 = vld [vmem:[%s0 + $0x168] sm:$0xff]
  %v61 = vld [vmem:[%s0 + $0x170] sm:$0xff]
  %v62 = vld [vmem:[%s0 + $0x178] sm:$0xff]
  %v63 = vld [vmem:[%s0 + $0x180] sm:$0xff]
  %v64 = vld [vmem:[%s0 + $0x188] sm:$0xff]
  %v65 = vld [vmem:[%s0 + $0x190] sm:$0xff]
  %v66 = vld [vmem:[%s0 + $0x198] sm:$0xff]
  %v67 = vld [vmem:[%s0 + $0x1a0] sm:$0xff]
  %v68 = vld [vmem:[%s0 + $0x1a8] sm:$0xff]
  %v69 = vld [vmem:[%s0 + $0x1b0] sm:$0xff]
  %v70 = vld [vmem:[%s0 + $0x1b8] sm:$0xff]
  %v71 = vld [vmem:[%s0 + $0x1c0] sm:$0xff]
  %v72 = vld [vmem:[%s0 + $0x1c8] sm:$0xff]
  %v73 = vld [vmem:[%s0 + $0x1d0] sm:$0xff]
  %v74 = vld [vmem:[%s0 + $0x1d8] sm:$0xff]
  %v75 = vld [vmem:[%s0 + $0x1e0] sm:$0xff]
  %v76 = vld [vmem:[%s0 + $0x1e8] sm:$0xff]
  %v77 = vld [vmem:[%s0 + $0x1f0] sm:$0xff]
  %v78 = vld [vmem:[%s0 + $0x1f8] sm:$0xff]
  %v79 = vld [vmem:[%s2] sm:$0xf]
  %81 = vset.pattern.permute.xlu0 0
  %82 = vperm.xlu0 %81, %v79
  %v83 = vpop.permute.xlu0 %82
  %vm85 = vcmask 261120
  %v87 = vsel %vm85, %v14, 0
  %v90 = vsel %vm85, %v15, 0
  %v93 = vsel %vm85, %v16, 0
  %v96 = vsel %vm85, %v17, 0
  %v99 = vsel %vm85, %v18, 0
  %v102 = vsel %vm85, %v19, 0
  %v105 = vsel %vm85, %v20, 0
  %v108 = vsel %vm85, %v21, 0
  %v111 = vsel %vm85, %v22, 0
  %v114 = vsel %vm85, %v23, 0
  %v117 = vsel %vm85, %v24, 0
  %v120 = vsel %vm85, %v25, 0
  %v123 = vsel %vm85, %v26, 0
  %v126 = vsel %vm85, %v27, 0
  %v129 = vsel %vm85, %v28, 0
  %v132 = vsel %vm85, %v29, 0
  %v135 = vsel %vm85, %v30, 0
  %v138 = vsel %vm85, %v31, 0
  %v141 = vsel %vm85, %v32, 0
  %v144 = vsel %vm85, %v33, 0
  %v147 = vsel %vm85, %v34, 0
  %v150 = vsel %vm85, %v35, 0
  %v153 = vsel %vm85, %v36, 0
  %v156 = vsel %vm85, %v37, 0
  %v159 = vsel %vm85, %v38, 0
  %v162 = vsel %vm85, %v39, 0
  %v165 = vsel %vm85, %v40, 0
  %v168 = vsel %vm85, %v41, 0
  %v171 = vsel %vm85, %v42, 0
  %v174 = vsel %vm85, %v43, 0
  %v177 = vsel %vm85, %v44, 0
  %v180 = vsel %vm85, %v45, 0
  %v183 = vsel %vm85, %v46, 0
  %v186 = vsel %vm85, %v47, 0
  %v189 = vsel %vm85, %v48, 0
  %v192 = vsel %vm85, %v49, 0
  %v195 = vsel %vm85, %v50, 0
  %v198 = vsel %vm85, %v51, 0
  %v201 = vsel %vm85, %v52, 0
  %v204 = vsel %vm85, %v53, 0
  %v207 = vsel %vm85, %v54, 0
  %v210 = vsel %vm85, %v55, 0
  %v213 = vsel %vm85, %v56, 0
  %v216 = vsel %vm85, %v57, 0
  %v219 = vsel %vm85, %v58, 0
  %v222 = vsel %vm85, %v59, 0
  %v225 = vsel %vm85, %v60, 0
  %v228 = vsel %vm85, %v61, 0
  %v231 = vsel %vm85, %v62, 0
  %v234 = vsel %vm85, %v63, 0
  %v237 = vsel %vm85, %v64, 0
  %v240 = vsel %vm85, %v65, 0
  %v243 = vsel %vm85, %v66, 0
  %v246 = vsel %vm85, %v67, 0
  %v249 = vsel %vm85, %v68, 0
  %v252 = vsel %vm85, %v69, 0
  %v255 = vsel %vm85, %v70, 0
  %v258 = vsel %vm85, %v71, 0
  %v261 = vsel %vm85, %v72, 0
  %v264 = vsel %vm85, %v73, 0
  %v267 = vsel %vm85, %v74, 0
  %v270 = vsel %vm85, %v75, 0
  %v273 = vsel %vm85, %v76, 0
  %v276 = vsel %vm85, %v77, 0
  %v279 = vsel %vm85, %v78, 0
  %281 = vmatprep.subr.mxu0 0.0
  %282 = vmatpush1.xpose.msra.mxu0 %v90
  %283 = vmatprep.subr.mxu0 0.0
  %284 = vmatpush1.xpose.msra.mxu0 %v93
  %285 = vmatprep.subr.mxu0 0.0
  %286 = vmatpush1.xpose.msra.mxu0 %v96
  %287 = vmatprep.subr.mxu0 0.0
  %288 = vmatpush1.xpose.msra.mxu0 %v99
  %289 = vmatprep.subr.mxu0 0.0
  %290 = vmatpush1.xpose.msra.mxu0 %v102
  %291 = vmatprep.subr.mxu0 0.0
  %292 = vmatpush1.xpose.msra.mxu0 %v105
  %293 = vmatprep.subr.mxu0 0.0
  %294 = vmatpush1.xpose.msra.mxu0 %v108
  %295 = vmatprep.subr.mxu0 0.0
  %296 = vmatpush1.xpose.msra.mxu0 %v111
  %297 = vmatprep.subr.mxu0 0.0
  %298 = vmatpush1.xpose.msra.mxu0 %v114
  %299 = vmatprep.subr.mxu0 0.0
  %300 = vmatpush1.xpose.msra.mxu0 %v117
  %301 = vmatprep.subr.mxu0 0.0
  %302 = vmatpush1.xpose.msra.mxu0 %v120
  %303 = vmatprep.subr.mxu0 0.0
  %304 = vmatpush1.xpose.msra.mxu0 %v123
  %305 = vmatprep.subr.mxu0 0.0
  %306 = vmatpush1.xpose.msra.mxu0 %v126
  %307 = vmatprep.subr.mxu0 0.0
  %308 = vmatpush1.xpose.msra.mxu0 %v129
  %309 = vmatprep.subr.mxu0 0.0
  %310 = vmatpush1.xpose.msra.mxu0 %v132
  %311 = vmatprep.subr.mxu0 0.0
  %312 = vmatpush1.xpose.msra.mxu0 %v135
  %313 = vmatprep.subr.mxu0 0.0
  %314 = vmatpush1.xpose.msra.mxu0 %v138
  %315 = vmatprep.subr.mxu0 0.0
  %316 = vmatpush1.xpose.msra.mxu0 %v141
  %317 = vmatprep.subr.mxu0 0.0
  %318 = vmatpush1.xpose.msra.mxu0 %v144
  %319 = vmatprep.subr.mxu0 0.0
  %320 = vmatpush1.xpose.msra.mxu0 %v147
  %321 = vmatprep.subr.mxu0 0.0
  %322 = vmatpush1.xpose.msra.mxu0 %v150
  %323 = vmatprep.subr.mxu0 0.0
  %324 = vmatpush1.xpose.msra.mxu0 %v153
  %325 = vmatprep.subr.mxu0 0.0
  %326 = vmatpush1.xpose.msra.mxu0 %v156
  %327 = vmatprep.subr.mxu0 0.0
  %328 = vmatpush1.xpose.msra.mxu0 %v159
  %329 = vmatprep.subr.mxu0 0.0
  %330 = vmatpush1.xpose.msra.mxu0 %v162
  %331 = vmatprep.subr.mxu0 0.0
  %332 = vmatpush1.xpose.msra.mxu0 %v165
  %333 = vmatprep.subr.mxu0 0.0
  %334 = vmatpush1.xpose.msra.mxu0 %v168
  %335 = vmatprep.subr.mxu0 0.0
  %336 = vmatpush1.xpose.msra.mxu0 %v171
  %337 = vmatprep.subr.mxu0 0.0
  %338 = vmatpush1.xpose.msra.mxu0 %v174
  %339 = vmatprep.subr.mxu0 0.0
  %340 = vmatpush1.xpose.msra.mxu0 %v177
  %341 = vmatprep.subr.mxu0 0.0
  %342 = vmatpush1.xpose.msra.mxu0 %v180
  %343 = vmatprep.subr.mxu0 0.0
  %344 = vmatpush1.xpose.msra.mxu0 %v183
  %345 = vmatprep.mubr.f32.mxu0 0.0
  %346 = vmatmul.mubr.f32.gmra.mrb[0].mxu0 %v87
  %v347 = vpop.f32.mrb[0].mxu0
  %v348 = vadd.f32 %v83, %v347
  %v349 = vpop.f32.mrb[0].mxu0
  %v350 = vadd.f32 %v83, %v349
  %351 = vdwg.mxu0
  %352 = vmatprep.subr.mxu0 0.0
  %353 = vmatpush1.xpose.msra.mxu0 %v186
  %354 = vmatprep.subr.mxu0 0.0
  %355 = vmatpush1.xpose.msra.mxu0 %v189
  %356 = vmatprep.subr.mxu0 0.0
  %357 = vmatpush1.xpose.msra.mxu0 %v192
  %358 = vmatprep.subr.mxu0 0.0
  %359 = vmatpush1.xpose.msra.mxu0 %v195
  %360 = vmatprep.subr.mxu0 0.0
  %361 = vmatpush1.xpose.msra.mxu0 %v198
  %362 = vmatprep.subr.mxu0 0.0
  %363 = vmatpush1.xpose.msra.mxu0 %v201
  %364 = vmatprep.subr.mxu0 0.0
  %365 = vmatpush1.xpose.msra.mxu0 %v204
  %366 = vmatprep.subr.mxu0 0.0
  %367 = vmatpush1.xpose.msra.mxu0 %v207
  %368 = vmatprep.subr.mxu0 0.0
  %369 = vmatpush1.xpose.msra.mxu0 %v210
  %370 = vmatprep.subr.mxu0 0.0
  %371 = vmatpush1.xpose.msra.mxu0 %v213
  %372 = vmatprep.subr.mxu0 0.0
  %373 = vmatpush1.xpose.msra.mxu0 %v216
  %374 = vmatprep.subr.mxu0 0.0
  %375 = vmatpush1.xpose.msra.mxu0 %v219
  %376 = vmatprep.subr.mxu0 0.0
  %377 = vmatpush1.xpose.msra.mxu0 %v222
  %378 = vmatprep.subr.mxu0 0.0
  %379 = vmatpush1.xpose.msra.mxu0 %v225
  %380 = vmatprep.subr.mxu0 0.0
  %381 = vmatpush1.xpose.msra.mxu0 %v228
  %382 = vmatprep.subr.mxu0 0.0
  %383 = vmatpush1.xpose.msra.mxu0 %v231
  %384 = vmatprep.subr.mxu0 0.0
  %385 = vmatpush1.xpose.msra.mxu0 %v234
  %386 = vmatprep.subr.mxu0 0.0
  %387 = vmatpush1.xpose.msra.mxu0 %v237
  %388 = vmatprep.subr.mxu0 0.0
  %389 = vmatpush1.xpose.msra.mxu0 %v240
  %390 = vmatprep.subr.mxu0 0.0
  %391 = vmatpush1.xpose.msra.mxu0 %v243
  %392 = vmatprep.subr.mxu0 0.0
  %393 = vmatpush1.xpose.msra.mxu0 %v246
  %394 = vmatprep.subr.mxu0 0.0
  %395 = vmatpush1.xpose.msra.mxu0 %v249
  %396 = vmatprep.subr.mxu0 0.0
  %397 = vmatpush1.xpose.msra.mxu0 %v252
  %398 = vmatprep.subr.mxu0 0.0
  %399 = vmatpush1.xpose.msra.mxu0 %v255
  %400 = vmatprep.subr.mxu0 0.0
  %401 = vmatpush1.xpose.msra.mxu0 %v258
  %402 = vmatprep.subr.mxu0 0.0
  %403 = vmatpush1.xpose.msra.mxu0 %v261
  %404 = vmatprep.subr.mxu0 0.0
  %405 = vmatpush1.xpose.msra.mxu0 %v264
  %406 = vmatprep.subr.mxu0 0.0
  %407 = vmatpush1.xpose.msra.mxu0 %v267
  %408 = vmatprep.subr.mxu0 0.0
  %409 = vmatpush1.xpose.msra.mxu0 %v270
  %410 = vmatprep.subr.mxu0 0.0
  %411 = vmatpush1.xpose.msra.mxu0 %v273
  %412 = vmatprep.subr.mxu0 0.0
  %413 = vmatpush1.xpose.msra.mxu0 %v276
  %414 = vmatprep.subr.mxu0 0.0
  %415 = vmatpush1.xpose.msra.mxu0 %v279
  %416 = vmatprep.mubr.f32.mxu0 0.0
  %417 = vmatmul.mubr.f32.gmra.mrb[0].mxu0 %v87
  %v418 = vpop.f32.mrb[0].mxu0
  %v419 = vadd.f32 %v83, %v418
  %v420 = vpop.f32.mrb[0].mxu0
  %v421 = vadd.f32 %v83, %v420
  %422 = vdwg.mxu0
  %v427 = vcombine.low %v348, %v350
  %v428 = vcombine.low %v419, %v421
  %431 = vst [vmem:[%s3] sm:$0xff] %v427
  %432 = vst [vmem:[%s3 + $0x8] sm:$0xff] %v428
  // Predicated region
  $region14: #{linear_classifier_token_forward.1} parent=0 // pred_check
    _
  $region15: #{linear_classifier_token_forward.1} parent=0 // pred_check_branch
    %434 = sbr.rel (0) target = $region17
  $region16: #{linear_classifier_token_forward.1} parent=0 // pred_region
    _
  $region17: #{linear_classifier_token_forward.1} parent=0 // pred_fallthru
    _
  // Predicated region
  $region18: #{linear_classifier_token_forward.1} parent=0 // pred_check
    _
  $region19: #{linear_classifier_token_forward.1} parent=0 // pred_check_branch
    %436 = sbr.rel (0) target = $region21
  $region20: #{linear_classifier_token_forward.1} parent=0 // pred_region
    _
  $region21: #{linear_classifier_token_forward.1} parent=0 // pred_fallthru
    _

</llo_original>
